<compile_context>
chip_gen: v5e
topology: v5e:2x2
jax: 0.10.0
libtpu: 0.0.40
codegen_flags: <defaults>
</compile_context>

<pallas_src>
import jax
import jax.numpy as jnp
from jax.experimental import pallas as pl
from jax.experimental.pallas import tpu as pltpu


def _round_up(x, m):
    return (x + m - 1) // m * m


def _pick_tm(M):
    """Tile along M.  Returns (tm, Mp); Mp only differs from M for huge ragged M."""
    for c in (256, 128, 64, 32, 16, 8):
        if M % c == 0:
            return c, M
    if M <= 1024:            # small ragged M: single full-extent block (allowed)
        return M, M
    Mp = _round_up(M, 256)   # large ragged M: pad (never hit in this script)
    return 256, Mp


def _pick_tn(N):
    for c in (256, 128):
        if N % c == 0:
            return c
    return N                 # full-extent block (64-channel layers, 10-class FC)


def _pick_tk(K):
    for c in (512, 384, 256, 128):
        if K % c == 0:
            return c
    return K                 # full-extent block (27 = 3*3*3 stem, 64/576, ...)


# ----------------------------------------------------------------------------
# Pallas kernel: tiled matmul with fused BN-fold / residual / ReLU epilogue
# ----------------------------------------------------------------------------
def _make_matmul_kernel(relu: bool, has_residual: bool):
    """acc += A @ B over K; at last K step: out = [relu](acc*scale + bias [+res])."""
    if has_residual:
        def kernel(a_ref, b_ref, s_ref, c_ref, r_ref, o_ref, acc_ref):
            k = pl.program_id(2)

            @pl.when(k == 0)
            def _():
                acc_ref[...] = jnp.zeros_like(acc_ref)

            acc_ref[...] += jnp.dot(a_ref[...], b_ref[...],
                                    preferred_element_type=jnp.float32)

            @pl.when(k == pl.num_programs(2) - 1)
            def _():
                out = acc_ref[...] * s_ref[...] + c_ref[...]
                out = out + r_ref[...].astype(jnp.float32)
                if relu:
                    out = jnp.maximum(out, 0.0)
                o_ref[...] = out.astype(o_ref.dtype)
    else:
        def kernel(a_ref, b_ref, s_ref, c_ref, o_ref, acc_ref):
            k = pl.program_id(2)

            @pl.when(k == 0)
            def _():
                acc_ref[...] = jnp.zeros_like(acc_ref)

            acc_ref[...] += jnp.dot(a_ref[...], b_ref[...],
                                    preferred_element_type=jnp.float32)

            @pl.when(k == pl.num_programs(2) - 1)
            def _():
                out = acc_ref[...] * s_ref[...] + c_ref[...]
                if relu:
                    out = jnp.maximum(out, 0.0)
                o_ref[...] = out.astype(o_ref.dtype)
    return kernel


def matmul_scale_bias(a, b, scale, bias, *, relu=False, residual=None,
                      out_dtype=jnp.bfloat16):
    """out = act(a @ b * scale + bias [+ residual]).

    a: (M, K) -> bf16 MXU operand, b: (K, N) bf16 (pre-packed), scale/bias:
    (1, N) f32, residual: (M, N) or None.  Tiled over (M, N, K); M/N grid axes
    are "parallel" (megacore on v7x), K is the innermost reduction with a
    persistent f32 VMEM accumulator.
    """
    M, K = a.shape
    K2, N = b.shape
    assert K == K2, (a.shape, b.shape)
    a = a.astype(jnp.bfloat16)
    b = b.astype(jnp.bfloat16)
    scale = scale.reshape(1, N).astype(jnp.float32)
    bias = bias.reshape(1, N).astype(jnp.float32)

    tm, Mp = _pick_tm(M)
    tn = _pick_tn(N)
    tk = _pick_tk(K)

    if Mp != M:  # only for large M not a multiple of 8 (never in this script)
        a = jnp.zeros((Mp, K), a.dtype).at[:M].set(a)
        if residual is not None:
            residual = jnp.zeros((Mp, N), residual.dtype).at[:M].set(residual)

    inputs = [a, b, scale, bias]
    in_specs = [
        pl.BlockSpec((tm, tk), lambda i, j, k: (i, k)),
        pl.BlockSpec((tk, tn), lambda i, j, k: (k, j)),
        pl.BlockSpec((1, tn), lambda i, j, k: (0, j)),
        pl.BlockSpec((1, tn), lambda i, j, k: (0, j)),
    ]
    if residual is not None:
        inputs.append(residual.astype(jnp.bfloat16))
        # Block index does not change over k, so the residual tile is DMA'd
        # once per (i, j) and held in VMEM for the whole K loop.
        in_specs.append(pl.BlockSpec((tm, tn), lambda i, j, k: (i, j)))

    out = pl.pallas_call(
        _make_matmul_kernel(relu, residual is not None),
        out_shape=jax.ShapeDtypeStruct((Mp, N), out_dtype),
        grid=(Mp // tm, N // tn, K // tk),
        in_specs=in_specs,
        out_specs=pl.BlockSpec((tm, tn), lambda i, j, k: (i, j)),
        scratch_shapes=[pltpu.VMEM((tm, tn), jnp.float32)],
        compiler_params=pltpu.CompilerParams(
            dimension_semantics=("parallel", "parallel", "arbitrary"),
            # Well below v7x's 64 MiB physical VMEM; actual tile footprint is
            # only a few MiB with these (tm, tn, tk) choices.
            vmem_limit_bytes=32 * 1024 * 1024,
        ),
    )(*inputs)
    return out[:M] if Mp != M else out


# ----------------------------------------------------------------------------
# Glue: im2col + conv-as-matmul
# ----------------------------------------------------------------------------
def im2col(x, kh, kw, stride, pad):
    """x: (N, H, W, C) -> patches (N*Ho*Wo, kh*kw*C), plus (Ho, Wo)."""
    N, H, W, C = x.shape
    Ho = (H + 2 * pad - kh) // stride + 1
    Wo = (W + 2 * pad - kw) // stride + 1
    if kh == 1 and kw == 1 and pad == 0:
        patches = x[:, ::stride, ::stride, :]
        return patches.reshape(N * Ho * Wo, C), Ho, Wo
    x_p = jnp.pad(x, ((0, 0), (pad, pad), (pad, pad), (0, 0)))
    cols = []
    for i in range(kh):
        for j in range(kw):
            cols.append(x_p[:, i:i + stride * Ho:stride,
                            j:j + stride * Wo:stride, :])
    patches = jnp.concatenate(cols, axis=-1)  # (N, Ho, Wo, kh*kw*C)
    return patches.reshape(N * Ho * Wo, kh * kw * C), Ho, Wo


def conv_bn(x, w_packed, scale, bias, *, kh, kw, stride, pad, relu,
            residual=None):
    """Conv2d(bias=False) + folded eval-mode BatchNorm (+residual) (+ReLU).

    x: (N, H, W, Cin) bf16; w_packed: (kh*kw*Cin, Cout) bf16 (pre-packed);
    scale/bias: (1, Cout) f32.
    """
    # TODO(synk): 3x3 convs still go through a kh*kw im2col expansion in plain
    # JAX (extra HBM traffic); a tap-accumulating direct-conv Pallas kernel
    # would remove it but needs Element-offset index maps.
    N = x.shape[0]
    cout = w_packed.shape[1]
    a, Ho, Wo = im2col(x, kh, kw, stride, pad)
    res = None if residual is None else residual.reshape(N * Ho * Wo, cout)
    out = matmul_scale_bias(a, w_packed, scale, bias, relu=relu, residual=res)
    return out.reshape(N, Ho, Wo, cout)


# ----------------------------------------------------------------------------
# Parameter init (deterministic, mirroring torchvision defaults), pre-packed
# ----------------------------------------------------------------------------
def init_params(key, num_classes=10):
    keys = jax.random.split(key, 64)
    it = iter(range(64))

    def nk():
        return keys[next(it)]

    def conv_w(cin, cout, k):
        # kaiming_normal_(mode="fan_out", nonlinearity="relu"); pre-packed to
        # (k*k*cin, cout) bf16 so the forward never re-reshapes/casts weights.
        fan_out = cout * k * k
        w = jax.random.normal(nk(), (k, k, cin, cout), jnp.float32)
        w = w * (2.0 / fan_out) ** 0.5
        return w.reshape(k * k * cin, cout).astype(jnp.bfloat16)

    def bn_fold(c, eps=1e-5):
        # torchvision defaults: gamma=1, beta=0, running_mean=0, running_var=1
        gamma = jnp.ones((c,), jnp.float32)
        beta = jnp.zeros((c,), jnp.float32)
        mean = jnp.zeros((c,), jnp.float32)
        var = jnp.ones((c,), jnp.float32)
        scale = gamma / jnp.sqrt(var + eps)
        bias = beta - mean * scale
        return scale.reshape(1, c), bias.reshape(1, c)

    params = {}
    # CIFAR stem: Conv2d(3, 64, 3, stride=1, padding=1, bias=False); maxpool=Identity
    params["conv1_w"] = conv_w(3, 64, 3)
    params["bn1_scale"], params["bn1_bias"] = bn_fold(64)

    # ResNet-18 layers: (in_c, out_c, stride_of_first_block), 2 BasicBlocks each
    layer_cfg = [(64, 64, 1), (64, 128, 2), (128, 256, 2), (256, 512, 2)]
    layers, strides = [], []
    for cin, cout, stride in layer_cfg:
        blocks, blk_strides = [], []
        for bi in range(2):
            s = stride if bi == 0 else 1
            in_c = cin if bi == 0 else cout
            blk = {
                "conv1_w": conv_w(in_c, cout, 3),
                "conv2_w": conv_w(cout, cout, 3),
            }
            blk["bn1_scale"], blk["bn1_bias"] = bn_fold(cout)
            blk["bn2_scale"], blk["bn2_bias"] = bn_fold(cout)
            if s != 1 or in_c != cout:
                blk["ds_w"] = conv_w(in_c, cout, 1)
                blk["ds_scale"], blk["ds_bias"] = bn_fold(cout)
            blocks.append(blk)
            blk_strides.append(s)
        layers.append(blocks)
        strides.append(blk_strides)
    params["layers"] = layers
    params["strides"] = strides  # static python ints

    # Linear probe: nn.Linear(512, num_classes), default uniform init (f32,
    # it is the trainable part; cast at use).
    bound = 1.0 / (512.0 ** 0.5)
    params["fc_w"] = jax.random.uniform(nk(), (512, num_classes), jnp.float32,
                                        -bound, bound)
    params["fc_b"] = jax.random.uniform(nk(), (num_classes,), jnp.float32,
                                        -bound, bound)
    return params


# ----------------------------------------------------------------------------
# Forward pass (ProbeResNet.forward)
# ----------------------------------------------------------------------------
def probe_resnet_forward(x_nchw, params):
    # NCHW (PyTorch) -> NHWC; activations kept in bf16 (native MXU operand,
    # half the HBM<->VMEM DMA bytes).  BN/residual/ReLU math stays f32.
    x = jnp.transpose(x_nchw, (0, 2, 3, 1)).astype(jnp.bfloat16)

    # --- frozen backbone (eval mode; BN running stats folded into scale/bias) ---
    # TODO(synk): parameter freezing / train()-vs-eval() mode switching has no
    # forward-pass equivalent; eval-mode BN semantics are what is implemented.
    x = conv_bn(x, params["conv1_w"], params["bn1_scale"], params["bn1_bias"],
                kh=3, kw=3, stride=1, pad=1, relu=True)
    # maxpool is nn.Identity() in the CIFAR variant.

    for blocks, blk_strides in zip(params["layers"], params["strides"]):
        for blk, s in zip(blocks, blk_strides):
            identity = x
            out = conv_bn(x, blk["conv1_w"], blk["bn1_scale"], blk["bn1_bias"],
                          kh=3, kw=3, stride=s, pad=1, relu=True)
            if "ds_w" in blk:
                identity = conv_bn(x, blk["ds_w"], blk["ds_scale"],
                                   blk["ds_bias"], kh=1, kw=1, stride=s, pad=0,
                                   relu=False)
            # conv2 + bn2 + residual add + ReLU fused in the matmul epilogue.
            x = conv_bn(out, blk["conv2_w"], blk["bn2_scale"], blk["bn2_bias"],
                        kh=3, kw=3, stride=1, pad=1, relu=True,
                        residual=identity)

    # --- fused global-average-pool + linear probe ---
    # mean_hw(x) @ W + b == x.reshape(B, HW*C) @ tile(W / HW, (HW, 1)) + b
    # -> one Pallas matmul; no separate pooling kernel, no (B, 512) feature
    # round trip through HBM.  (Backbone fc is Identity.)
    B, H, W, C = x.shape
    hw = H * W
    num_classes = params["fc_w"].shape[1]
    a = x.reshape(B, hw * C)
    w_fused = jnp.tile((params["fc_w"] * (1.0 / hw)).astype(jnp.bfloat16),
                       (hw, 1))
    logits = matmul_scale_bias(
        a, w_fused,
        jnp.ones((1, num_classes), jnp.float32),
        params["fc_b"].reshape(1, num_classes),
        relu=False, out_dtype=jnp.float32)
    return logits


if __name__ == "__main__":
    key = jax.random.PRNGKey(0)
    pkey, xkey = jax.random.split(key)

    num_classes = 10
    params = init_params(pkey, num_classes=num_classes)

    # Small CIFAR-like input, NCHW like PyTorch: (batch=2, channels=3, 16, 16)
    x = jax.random.normal(xkey, (2, 3, 16, 16), jnp.float32)

    logits = probe_resnet_forward(x, params)
    logits = jax.block_until_ready(logits)
    assert logits.shape == (2, num_classes), logits.shape
    assert jnp.all(jnp.isfinite(logits))
    print("KERNEL_OK")
</pallas_src>

<mosaic_0001>
module attributes {stable_mosaic.version = 11 : i64} {
  func.func @kernel(%arg0: i32, %arg1: i32, %arg2: i32, %arg3: memref<256x27xbf16, #tpu.memory_space<vmem>>, %arg4: memref<27x64xbf16, #tpu.memory_space<vmem>>, %arg5: memref<1x64xf32, #tpu.memory_space<vmem>>, %arg6: memref<1x64xf32, #tpu.memory_space<vmem>>, %arg7: memref<256x64xbf16, #tpu.memory_space<vmem>>, %arg8: memref<256x64xf32, #tpu.memory_space<vmem>>) attributes {dimension_semantics = [#tpu.dimension_semantics<parallel>, #tpu.dimension_semantics<parallel>, #tpu.dimension_semantics<arbitrary>], iteration_bounds = array<i64: 2, 1, 1>, scalar_prefetch = 0 : i64, scratch_operands = 1 : i64, tpu.core_type = #tpu.core_type<tc>, window_params = [{transform_indices = @transform_0, window_bounds = array<i64: 256, 27>}, {transform_indices = @transform_1, window_bounds = array<i64: 27, 64>}, {transform_indices = @transform_2, window_bounds = array<i64: 1, 64>}, {transform_indices = @transform_3, window_bounds = array<i64: 1, 64>}, {transform_indices = @transform_4, window_bounds = array<i64: 256, 64>}]} {
    %c0_i32 = arith.constant 0 : i32
    %0 = arith.cmpi eq, %arg2, %c0_i32 : i32
    %1 = arith.extui %0 : i1 to i32
    %c0_i32_0 = arith.constant 0 : i32
    %2 = arith.cmpi ne, %1, %c0_i32_0 : i32
    scf.if %2 {
      %cst_10 = arith.constant 0.000000e+00 : f32
      %12 = vector.broadcast %cst_10 : f32 to vector<256x64xf32>
      %c0_11 = arith.constant 0 : index
      %c0_12 = arith.constant 0 : index
      %13 = vector.load %arg8[%c0_11, %c0_12] : memref<256x64xf32, #tpu.memory_space<vmem>>, vector<256x64xf32>
      tpu.vector_store %arg8[%c0_11, %c0_12], %12 {strides = array<i32>} : memref<256x64xf32, #tpu.memory_space<vmem>>, vector<256x64xf32>,
    } else {
    }
    %c0 = arith.constant 0 : index
    %c0_1 = arith.constant 0 : index
    %3 = vector.load %arg8[%c0, %c0_1] : memref<256x64xf32, #tpu.memory_space<vmem>>, vector<256x64xf32>
    %c0_2 = arith.constant 0 : index
    %c0_3 = arith.constant 0 : index
    %4 = vector.load %arg3[%c0_2, %c0_3] : memref<256x27xbf16, #tpu.memory_space<vmem>>, vector<256x27xbf16>
    %c0_4 = arith.constant 0 : index
    %c0_5 = arith.constant 0 : index
    %5 = vector.load %arg4[%c0_4, %c0_5] : memref<27x64xbf16, #tpu.memory_space<vmem>>, vector<27x64xbf16>
    %cst = arith.constant dense<0.000000e+00> : vector<256x64xf32>
    %6 = tpu.matmul %4, %5, %cst {dimension_numbers = #tpu.dot_dimension_numbers<[1], [0], [0], [1], [0, 0, 1, 1], [], []>} : vector<256x27xbf16>, vector<27x64xbf16>, vector<256x64xf32> -> vector<256x64xf32>
    %7 = arith.addf %3, %6 : vector<256x64xf32>
    %c0_6 = arith.constant 0 : index
    %c0_7 = arith.constant 0 : index
    %8 = vector.load %arg8[%c0_6, %c0_7] : memref<256x64xf32, #tpu.memory_space<vmem>>, vector<256x64xf32>
    tpu.vector_store %arg8[%c0_6, %c0_7], %7 {strides = array<i32>} : memref<256x64xf32, #tpu.memory_space<vmem>>, vector<256x64xf32>,
    %c0_i32_8 = arith.constant 0 : i32
    %9 = arith.cmpi eq, %arg2, %c0_i32_8 : i32
    %10 = arith.extui %9 : i1 to i32
    %c0_i32_9 = arith.constant 0 : i32
    %11 = arith.cmpi ne, %10, %c0_i32_9 : i32
    scf.if %11 {
      %c0_10 = arith.constant 0 : index
      %c0_11 = arith.constant 0 : index
      %12 = vector.load %arg8[%c0_10, %c0_11] : memref<256x64xf32, #tpu.memory_space<vmem>>, vector<256x64xf32>
      %c0_12 = arith.constant 0 : index
      %c0_13 = arith.constant 0 : index
      %13 = vector.load %arg5[%c0_12, %c0_13] : memref<1x64xf32, #tpu.memory_space<vmem>>, vector<1x64xf32>
      %14 = vector.broadcast %13 : vector<1x64xf32> to vector<256x64xf32>
      %15 = arith.mulf %12, %14 : vector<256x64xf32>
      %c0_14 = arith.constant 0 : index
      %c0_15 = arith.constant 0 : index
      %16 = vector.load %arg6[%c0_14, %c0_15] : memref<1x64xf32, #tpu.memory_space<vmem>>, vector<1x64xf32>
      %17 = vector.broadcast %16 : vector<1x64xf32> to vector<256x64xf32>
      %18 = arith.addf %15, %17 : vector<256x64xf32>
      %cst_16 = arith.constant 0.000000e+00 : f32
      %19 = vector.broadcast %cst_16 : f32 to vector<256x64xf32>
      %20 = arith.maximumf %18, %19 : vector<256x64xf32>
      %21 = arith.truncf %20 : vector<256x64xf32> to vector<256x64xbf16>
      %c0_17 = arith.constant 0 : index
      %c0_18 = arith.constant 0 : index
      %22 = vector.load %arg7[%c0_17, %c0_18] : memref<256x64xbf16, #tpu.memory_space<vmem>>, vector<256x64xbf16>
      tpu.vector_store %arg7[%c0_17, %c0_18], %21 {strides = array<i32>} : memref<256x64xbf16, #tpu.memory_space<vmem>>, vector<256x64xbf16>,
    } else {
    }
    return
  }
  func.func @transform_0(%arg0: i32, %arg1: i32, %arg2: i32) -> (i32, i32) {
    %c0_i32 = arith.constant 0 : i32
    return %arg0, %arg2 : i32, i32
  }
  func.func @transform_1(%arg0: i32, %arg1: i32, %arg2: i32) -> (i32, i32) {
    %c0_i32 = arith.constant 0 : i32
    return %arg2, %arg1 : i32, i32
  }
  func.func @transform_2(%arg0: i32, %arg1: i32, %arg2: i32) -> (i32, i32) {
    %c0_i32 = arith.constant 0 : i32
    %c0_i32_0 = arith.constant 0 : i32
    return %c0_i32, %arg1 : i32, i32
  }
  func.func @transform_3(%arg0: i32, %arg1: i32, %arg2: i32) -> (i32, i32) {
    %c0_i32 = arith.constant 0 : i32
    %c0_i32_0 = arith.constant 0 : i32
    return %c0_i32, %arg1 : i32, i32
  }
  func.func @transform_4(%arg0: i32, %arg1: i32, %arg2: i32) -> (i32, i32) {
    %c0_i32 = arith.constant 0 : i32
    return %arg0, %arg1 : i32, i32
  }
}

</mosaic_0001>

<llo_original>
// kernel: tpu_custom_call.1
$region0: #{tpu_custom_call.1}
  #allocation0 [shape = 'u32[]', space=smem, size = 0x4, offset = 0x4, fixed_abs, tag = 'smem constant byte address 0x4 - core index']
  #allocation1 [shape = 'u32[72,128]{1,0:T(1,128)}', space=vmem, size = 0x9000, scoped, tag = 'internal scratch']
  #allocation2 [shape = 'f32[256,64]{1,0:T(8,128)}', space=vmem, size = 0x20000, scoped, tag = 'scratch operand']
  %s0 = inlined_call_operand.vmem [shape: bf16[512,27], index: 0, kind: input, shape index: {}]
  %s1 = inlined_call_operand.vmem [shape: bf16[27,64], index: 1, kind: input, shape index: {}]
  %s2 = inlined_call_operand.vmem [shape: f32[1,64], index: 2, kind: input, shape index: {}]
  %s3 = inlined_call_operand.vmem [shape: f32[1,64], index: 3, kind: input, shape index: {}]
  %s4 = inlined_call_operand.vmem [shape: bf16[512,64], index: 4, kind: output, shape index: {}]
  %s5 = sld [smem:[#allocation0]]
  $region57: #{tpu_custom_call.1} parent=0
    _
  %s7 = ssub.s32 1, %s5
  %s8 = scalar_select 0, %s7, %s5
  loop: start=0, step=1, limit=4
  $region2: #{tpu_custom_call.1} parent=0 // loop_pre_header
    _
  $region3: #{tpu_custom_call.1} parent=0 // loop_header
    %s10 = sphi 0, %s14
    %p11 = scmp.ge.s32.totalorder %s10, 4
    %s17 = sphi 0, %s36
    %s18 = sphi 0, %s32
    %s19 = sphi 0, %s28
    %s20 = sphi 0, %s17
    %s21 = sphi 0, %s18
    %s22 = sphi 0, %s19
    %s23 = sphi 0, %s20
    %s24 = sphi 0, %s21
    %s25 = sphi 0, %s22
    %s41 = sphi 0, %s43
    %s44 = sphi 0, %s41
    %s45 = sphi 0, %s44
    %s61 = sphi 0, %s45
    %s69 = sphi 0, %s71
    %s72 = sphi 0, %s69
    %s73 = sphi 0, %s72
    %s89 = sphi 0, %s73
    %s95 = sphi 0, %s97
    %s98 = sphi 0, %s95
    %s99 = sphi 0, %s98
    %s115 = sphi 0, %s99
    %s121 = sphi 0, %s123
    %s124 = sphi 0, %s121
    %s125 = sphi 0, %s124
    %s141 = sphi 0, %s125
    %s149 = sphi 0, %s151
    %s152 = sphi 0, %s149
    %s153 = sphi 0, %s152
    %s169 = sphi 0, %s153
  $region4: #{tpu_custom_call.1} parent=0 // loop_header_branch
    %13 = sbr.rel (%p11) target = $region8
  $region5: #{tpu_custom_call.1} parent=0 // loop_body
    %s15 = ssub.s32 %s10, 1
    %s16 = ssub.s32 %s10, 2
    %s26 = sadd.s32 1, %s19
    %p27 = scmp.ge.s32.totalorder %s26, 1
    %s28 = scalar_select %p27, 0, %s26
    %s29 = sadd.s32 1, %s18
    %s30 = scalar_select %p27, %s29, %s18
    %p31 = scmp.ge.s32.totalorder %s30, 1
    %s32 = scalar_select %p31, 0, %s30
    %s33 = sadd.s32 1, %s17
    %s34 = scalar_select %p31, %s33, %s17
    %p35 = scmp.ge.s32.totalorder %s34, 2
    %s36 = scalar_select %p35, 0, %s34
    %s37 = ssub.s32 %s17, %s36
    %s38 = ssub.s32 %s19, %s28
    %s39 = sor.u32 %s37, %s38
    %p40 = scmp.eq.s32.totalorder %s39, 0
    %s42 = sadd.s32 %s41, 1
    %s43 = scalar_select %p40, %s41, %s42
    %p46 = pneg %p40
    %p47 = scmp.eq.s32.totalorder %s10, 1
    %p48 = por %p46, %p47
    %p49 = scmp.ne.s32.totalorder %s41, %s44
    %p50 = scmp.eq.s32.totalorder %s10, 0
    %p51 = por %p49, %p50
    %p52 = scmp.ne.s32.totalorder %s41, %s44
    %p53 = scmp.eq.s32.totalorder %s15, 1
    %p54 = por %p52, %p53
    %p55 = scmp.ne.s32.totalorder %s44, %s45
    %p56 = scmp.eq.s32.totalorder %s15, 0
    %p57 = por %p55, %p56
    %p58 = scmp.ne.s32.totalorder %s44, %s45
    %p59 = scmp.eq.s32.totalorder %s16, 1
    %p60 = por %p58, %p59
    %p62 = scmp.ne.s32.totalorder %s45, %s61
    %p63 = scmp.eq.s32.totalorder %s16, 0
    %p64 = por %p62, %p63
    %s65 = ssub.s32 %s19, %s28
    %s66 = ssub.s32 %s18, %s32
    %s67 = sor.u32 %s65, %s66
    %p68 = scmp.eq.s32.totalorder %s67, 0
    %s70 = sadd.s32 %s69, 1
    %s71 = scalar_select %p68, %s69, %s70
    %p74 = pneg %p68
    %p75 = scmp.eq.s32.totalorder %s10, 1
    %p76 = por %p74, %p75
    %p77 = scmp.ne.s32.totalorder %s69, %s72
    %p78 = scmp.eq.s32.totalorder %s10, 0
    %p79 = por %p77, %p78
    %p80 = scmp.ne.s32.totalorder %s69, %s72
    %p81 = scmp.eq.s32.totalorder %s15, 1
    %p82 = por %p80, %p81
    %p83 = scmp.ne.s32.totalorder %s72, %s73
    %p84 = scmp.eq.s32.totalorder %s15, 0
    %p85 = por %p83, %p84
    %p86 = scmp.ne.s32.totalorder %s72, %s73
    %p87 = scmp.eq.s32.totalorder %s16, 1
    %p88 = por %p86, %p87
    %p90 = scmp.ne.s32.totalorder %s73, %s89
    %p91 = scmp.eq.s32.totalorder %s16, 0
    %p92 = por %p90, %p91
    %s93 = ssub.s32 %s18, %s32
    %p94 = scmp.eq.s32.totalorder %s93, 0
    %s96 = sadd.s32 %s95, 1
    %s97 = scalar_select %p94, %s95, %s96
    %p100 = pneg %p94
    %p101 = scmp.eq.s32.totalorder %s10, 1
    %p102 = por %p100, %p101
    %p103 = scmp.ne.s32.totalorder %s95, %s98
    %p104 = scmp.eq.s32.totalorder %s10, 0
    %p105 = por %p103, %p104
    %p106 = scmp.ne.s32.totalorder %s95, %s98
    %p107 = scmp.eq.s32.totalorder %s15, 1
    %p108 = por %p106, %p107
    %p109 = scmp.ne.s32.totalorder %s98, %s99
    %p110 = scmp.eq.s32.totalorder %s15, 0
    %p111 = por %p109, %p110
    %p112 = scmp.ne.s32.totalorder %s98, %s99
    %p113 = scmp.eq.s32.totalorder %s16, 1
    %p114 = por %p112, %p113
    %p116 = scmp.ne.s32.totalorder %s99, %s115
    %p117 = scmp.eq.s32.totalorder %s16, 0
    %p118 = por %p116, %p117
    %s119 = ssub.s32 %s18, %s32
    %p120 = scmp.eq.s32.totalorder %s119, 0
    %s122 = sadd.s32 %s121, 1
    %s123 = scalar_select %p120, %s121, %s122
    %p126 = pneg %p120
    %p127 = scmp.eq.s32.totalorder %s10, 1
    %p128 = por %p126, %p127
    %p129 = scmp.ne.s32.totalorder %s121, %s124
    %p130 = scmp.eq.s32.totalorder %s10, 0
    %p131 = por %p129, %p130
    %p132 = scmp.ne.s32.totalorder %s121, %s124
    %p133 = scmp.eq.s32.totalorder %s15, 1
    %p134 = por %p132, %p133
    %p135 = scmp.ne.s32.totalorder %s124, %s125
    %p136 = scmp.eq.s32.totalorder %s15, 0
    %p137 = por %p135, %p136
    %p138 = scmp.ne.s32.totalorder %s124, %s125
    %p139 = scmp.eq.s32.totalorder %s16, 1
    %p140 = por %p138, %p139
    %p142 = scmp.ne.s32.totalorder %s125, %s141
    %p143 = scmp.eq.s32.totalorder %s16, 0
    %p144 = por %p142, %p143
    %s145 = ssub.s32 %s17, %s36
    %s146 = ssub.s32 %s18, %s32
    %s147 = sor.u32 %s145, %s146
    %p148 = scmp.eq.s32.totalorder %s147, 0
    %s150 = sadd.s32 %s149, 1
    %s151 = scalar_select %p148, %s149, %s150
    %p154 = pneg %p148
    %p155 = scmp.eq.s32.totalorder %s10, 1
    %p156 = por %p154, %p155
    %p157 = scmp.ne.s32.totalorder %s149, %s152
    %p158 = scmp.eq.s32.totalorder %s10, 0
    %p159 = por %p157, %p158
    %p160 = scmp.ne.s32.totalorder %s149, %s152
    %p161 = scmp.eq.s32.totalorder %s15, 1
    %p162 = por %p160, %p161
    %p163 = scmp.ne.s32.totalorder %s152, %s153
    %p164 = scmp.eq.s32.totalorder %s15, 0
    %p165 = por %p163, %p164
    %p166 = scmp.ne.s32.totalorder %s152, %s153
    %p167 = scmp.eq.s32.totalorder %s16, 1
    %p168 = por %p166, %p167
    %p170 = scmp.ne.s32.totalorder %s153, %s169
    %p171 = scmp.eq.s32.totalorder %s16, 0
    %p172 = por %p170, %p171
    %p173 = scmp.le.s32.totalorder 1, %s10
    %p174 = scmp.lt.s32.totalorder %s10, 3
    %p175 = pnand %p173, %p174
    %p176 = pneg %p175
    // Predicated region
    $region9: #{tpu_custom_call.1} parent=5 // pred_check
      _
    $region10: #{tpu_custom_call.1} parent=5 // pred_check_branch
      %178 = sbr.rel (%p175) target = $region12
    $region11: #{tpu_custom_call.1} parent=5 // pred_region
      %s179 = ssub.s32 %s10, 1
      // Predicated region
      $region13: #{tpu_custom_call.1} parent=11 // pred_check
        %p180 = pneg %p85
      $region14: #{tpu_custom_call.1} parent=11 // pred_check_branch
        %182 = sbr.rel (%p180) target = $region16
      $region15: #{tpu_custom_call.1} parent=11 // pred_region
        %s183 = smul.u32 4, %s22
        %p184 = scmp.lt.s32.totalorder %s183, 3
        %s185 = scalar_select %p184, %s183, 3
        %p186 = scmp.lt.s32.totalorder %s21, 0
        %s187 = scalar_select %p186, %s21, 0
        %s188 = sadd.s32 %s187, %s185
        %s189 = smul.addr %s188, 4
        %s190 = scalar_lea.vmem %s1, %s189
        %s191 = smul.u32 4, %s22
      $region16: #{tpu_custom_call.1} parent=11 // pred_fallthru
        _
      // Predicated region
      $region17: #{tpu_custom_call.1} parent=11 // pred_check
        %p192 = pneg %p111
      $region18: #{tpu_custom_call.1} parent=11 // pred_check_branch
        %194 = sbr.rel (%p192) target = $region20
      $region19: #{tpu_custom_call.1} parent=11 // pred_region
        %p195 = scmp.lt.s32.totalorder %s21, 0
        %s196 = scalar_select %p195, %s21, 0
        %s197 = scalar_lea.vmem %s2, %s196
      $region20: #{tpu_custom_call.1} parent=11 // pred_fallthru
        _
      // Predicated region
      $region21: #{tpu_custom_call.1} parent=11 // pred_check
        %p198 = pneg %p137
      $region22: #{tpu_custom_call.1} parent=11 // pred_check_branch
        %200 = sbr.rel (%p198) target = $region24
      $region23: #{tpu_custom_call.1} parent=11 // pred_region
        %p201 = scmp.lt.s32.totalorder %s21, 0
        %s202 = scalar_select %p201, %s21, 0
        %s203 = scalar_lea.vmem %s3, %s202
      $region24: #{tpu_custom_call.1} parent=11 // pred_fallthru
        _
    $region12: #{tpu_custom_call.1} parent=5 // pred_fallthru
      _
    %p204 = scmp.lt.s32.totalorder %s10, 2
    // Predicated region
    $region25: #{tpu_custom_call.1} parent=5 // pred_check
      %p205 = pneg %p204
    $region26: #{tpu_custom_call.1} parent=5 // pred_check_branch
      %207 = sbr.rel (%p205) target = $region28
    $region27: #{tpu_custom_call.1} parent=5 // pred_region
      // Predicated region
      $region29: #{tpu_custom_call.1} parent=27 // pred_check
        %p208 = pneg %p51
      $region30: #{tpu_custom_call.1} parent=27 // pred_check_branch
        %210 = sbr.rel (%p208) target = $region32
      $region31: #{tpu_custom_call.1} parent=27 // pred_region
        %s211 = smul.u32 32, %s17
        %p212 = scmp.lt.s32.totalorder %s211, 63
        %s213 = scalar_select %p212, %s211, 63
        %p214 = scmp.lt.s32.totalorder %s19, 0
        %s215 = scalar_select %p214, %s19, 0
        %s216 = sadd.s32 %s215, %s213
        %s217 = smul.addr %s216, 4
        %s218 = scalar_lea.vmem %s0, %s217
        %s219 = smul.u32 32, %s17
      $region32: #{tpu_custom_call.1} parent=27 // pred_fallthru
        _
    $region28: #{tpu_custom_call.1} parent=5 // pred_fallthru
      _
    %p220 = scmp.le.s32.totalorder 1, %s10
    %p221 = scmp.lt.s32.totalorder %s10, 3
    %p222 = pnand %p220, %p221
    %p223 = pneg %p222
    // Predicated region
    $region33: #{tpu_custom_call.1} parent=5 // pred_check
      _
    $region34: #{tpu_custom_call.1} parent=5 // pred_check_branch
      %225 = sbr.rel (%p222) target = $region36
    $region35: #{tpu_custom_call.1} parent=5 // pred_region
      %s226 = ssub.s32 %s10, 1
      %s227 = smul.u32 32, %s20
      %p228 = scmp.lt.s32.totalorder %s227, 63
      %s229 = scalar_select %p228, %s227, 63
      %p230 = scmp.lt.s32.totalorder %s22, 0
      %s231 = scalar_select %p230, %s22, 0
      %s232 = sadd.s32 %s231, %s229
      %s233 = smul.addr %s232, 4
      %s234 = scalar_lea.vmem %s0, %s233
      %p235 = pneg %p57
      %p236 = pneg %p54
      %s237 = smul.u32 4, %s22
      %p238 = scmp.lt.s32.totalorder %s237, 3
      %s239 = scalar_select %p238, %s237, 3
      %p240 = scmp.lt.s32.totalorder %s21, 0
      %s241 = scalar_select %p240, %s21, 0
      %s242 = sadd.s32 %s241, %s239
      %s243 = smul.addr %s242, 4
      %s244 = scalar_lea.vmem %s1, %s243
      %p245 = pneg %p85
      %p246 = pneg %p82
      %p247 = scmp.lt.s32.totalorder %s21, 0
      %s248 = scalar_select %p247, %s21, 0
      %s249 = scalar_lea.vmem %s2, %s248
      %p250 = pneg %p111
      %p251 = pneg %p108
      %p252 = scmp.lt.s32.totalorder %s21, 0
      %s253 = scalar_select %p252, %s21, 0
      %s254 = scalar_lea.vmem %s3, %s253
      %p255 = pneg %p137
      %p256 = pneg %p134
      %p257 = pneg %p165
      %p258 = pneg %p162
      %s259 = smul.u32 32, %s20
      %p260 = scmp.lt.s32.totalorder %s259, 63
      %s261 = scalar_select %p260, %s259, 63
      %p262 = scmp.lt.s32.totalorder %s21, 0
      %s263 = scalar_select %p262, %s21, 0
      %s264 = sadd.s32 %s263, %s261
      %s265 = smul.addr %s264, 4
      %s266 = scalar_lea.vmem %s4, %s265
      %s267 = smul.u32 32, %s20
      %p268 = scmp.lt.s32.totalorder %s267, 63
      %s269 = scalar_select %p268, %s267, 63
      %p270 = scmp.lt.s32.totalorder %s22, 0
      %s271 = scalar_select %p270, %s22, 0
      %s272 = sadd.s32 %s271, %s269
      %s273 = smul.addr %s272, 4
      %s274 = scalar_lea.vmem %s0, %s273
      %s275 = smul.u32 32, %s20
      %s276 = smul.u32 4, %s22
      %p277 = scmp.lt.s32.totalorder %s276, 3
      %s278 = scalar_select %p277, %s276, 3
      %p279 = scmp.lt.s32.totalorder %s21, 0
      %s280 = scalar_select %p279, %s21, 0
      %s281 = sadd.s32 %s280, %s278
      %s282 = smul.addr %s281, 4
      %s283 = scalar_lea.vmem %s1, %s282
      %s284 = smul.u32 4, %s22
      %p285 = scmp.lt.s32.totalorder %s21, 0
      %s286 = scalar_select %p285, %s21, 0
      %s287 = scalar_lea.vmem %s2, %s286
      %p288 = scmp.lt.s32.totalorder %s21, 0
      %s289 = scalar_select %p288, %s21, 0
      %s290 = scalar_lea.vmem %s3, %s289
      %s291 = smul.u32 32, %s20
      %p292 = scmp.lt.s32.totalorder %s291, 63
      %s293 = scalar_select %p292, %s291, 63
      %p294 = scmp.lt.s32.totalorder %s21, 0
      %s295 = scalar_select %p294, %s21, 0
      %s296 = sadd.s32 %s295, %s293
      %s297 = smul.addr %s296, 4
      %s298 = scalar_lea.vmem %s4, %s297
      %s299 = smul.u32 32, %s20
      %p301 = scmp.eq.s32.totalorder %s22, 0
      // Predicated region
      $region37: #{tpu_custom_call.1} parent=35 // pred_check
        %p302 = pneg %p301
      $region38: #{tpu_custom_call.1} parent=35 // pred_check_branch
        %304 = sbr.rel (%p302) target = $region40
      $region39: #{tpu_custom_call.1} parent=35 // pred_region
        %vm305 = vcmask 523264
        %306 = vst.msk [vmem:[#allocation2] sm:$0xff] %vm305, 0.0
        %307 = vst.msk [vmem:[#allocation2 + $0x8] sm:$0xff] %vm305, 0.0
        %308 = vst.msk [vmem:[#allocation2 + $0x10] sm:$0xff] %vm305, 0.0
        %309 = vst.msk [vmem:[#allocation2 + $0x18] sm:$0xff] %vm305, 0.0
        %310 = vst.msk [vmem:[#allocation2 + $0x20] sm:$0xff] %vm305, 0.0
        %311 = vst.msk [vmem:[#allocation2 + $0x28] sm:$0xff] %vm305, 0.0
        %312 = vst.msk [vmem:[#allocation2 + $0x30] sm:$0xff] %vm305, 0.0
        %313 = vst.msk [vmem:[#allocation2 + $0x38] sm:$0xff] %vm305, 0.0
        %314 = vst.msk [vmem:[#allocation2 + $0x40] sm:$0xff] %vm305, 0.0
        %315 = vst.msk [vmem:[#allocation2 + $0x48] sm:$0xff] %vm305, 0.0
        %316 = vst.msk [vmem:[#allocation2 + $0x50] sm:$0xff] %vm305, 0.0
        %317 = vst.msk [vmem:[#allocation2 + $0x58] sm:$0xff] %vm305, 0.0
        %318 = vst.msk [vmem:[#allocation2 + $0x60] sm:$0xff] %vm305, 0.0
        %319 = vst.msk [vmem:[#allocation2 + $0x68] sm:$0xff] %vm305, 0.0
        %320 = vst.msk [vmem:[#allocation2 + $0x70] sm:$0xff] %vm305, 0.0
        %321 = vst.msk [vmem:[#allocation2 + $0x78] sm:$0xff] %vm305, 0.0
        %322 = vst.msk [vmem:[#allocation2 + $0x80] sm:$0xff] %vm305, 0.0
        %323 = vst.msk [vmem:[#allocation2 + $0x88] sm:$0xff] %vm305, 0.0
        %324 = vst.msk [vmem:[#allocation2 + $0x90] sm:$0xff] %vm305, 0.0
        %325 = vst.msk [vmem:[#allocation2 + $0x98] sm:$0xff] %vm305, 0.0
        %326 = vst.msk [vmem:[#allocation2 + $0xa0] sm:$0xff] %vm305, 0.0
        %327 = vst.msk [vmem:[#allocation2 + $0xa8] sm:$0xff] %vm305, 0.0
        %328 = vst.msk [vmem:[#allocation2 + $0xb0] sm:$0xff] %vm305, 0.0
        %329 = vst.msk [vmem:[#allocation2 + $0xb8] sm:$0xff] %vm305, 0.0
        %330 = vst.msk [vmem:[#allocation2 + $0xc0] sm:$0xff] %vm305, 0.0
        %331 = vst.msk [vmem:[#allocation2 + $0xc8] sm:$0xff] %vm305, 0.0
        %332 = vst.msk [vmem:[#allocation2 + $0xd0] sm:$0xff] %vm305, 0.0
        %333 = vst.msk [vmem:[#allocation2 + $0xd8] sm:$0xff] %vm305, 0.0
        %334 = vst.msk [vmem:[#allocation2 + $0xe0] sm:$0xff] %vm305, 0.0
        %335 = vst.msk [vmem:[#allocation2 + $0xe8] sm:$0xff] %vm305, 0.0
        %336 = vst.msk [vmem:[#allocation2 + $0xf0] sm:$0xff] %vm305, 0.0
        %337 = vst.msk [vmem:[#allocation2 + $0xf8] sm:$0xff] %vm305, 0.0
      $region40: #{tpu_custom_call.1} parent=35 // pred_fallthru
        _
      %v338 = vld [vmem:[#allocation2] sm:$0xff]
      %v339 = vld [vmem:[#allocation2 + $0x8] sm:$0xff]
      %v340 = vld [vmem:[#allocation2 + $0x10] sm:$0xff]
      %v341 = vld [vmem:[#allocation2 + $0x18] sm:$0xff]
      %v342 = vld [vmem:[#allocation2 + $0x20] sm:$0xff]
      %v343 = vld [vmem:[#allocation2 + $0x28] sm:$0xff]
      %v344 = vld [vmem:[#allocation2 + $0x30] sm:$0xff]
      %v345 = vld [vmem:[#allocation2 + $0x38] sm:$0xff]
      %v346 = vld [vmem:[#allocation2 + $0x40] sm:$0xff]
      %v347 = vld [vmem:[#allocation2 + $0x48] sm:$0xff]
      %v348 = vld [vmem:[#allocation2 + $0x50] sm:$0xff]
      %v349 = vld [vmem:[#allocation2 + $0x58] sm:$0xff]
      %v350 = vld [vmem:[#allocation2 + $0x60] sm:$0xff]
      %v351 = vld [vmem:[#allocation2 + $0x68] sm:$0xff]
      %v352 = vld [vmem:[#allocation2 + $0x70] sm:$0xff]
      %v353 = vld [vmem:[#allocation2 + $0x78] sm:$0xff]
      %v354 = vld [vmem:[#allocation2 + $0x80] sm:$0xff]
      %v355 = vld [vmem:[#allocation2 + $0x88] sm:$0xff]
      %v356 = vld [vmem:[#allocation2 + $0x90] sm:$0xff]
      %v357 = vld [vmem:[#allocation2 + $0x98] sm:$0xff]
      %v358 = vld [vmem:[#allocation2 + $0xa0] sm:$0xff]
      %v359 = vld [vmem:[#allocation2 + $0xa8] sm:$0xff]
      %v360 = vld [vmem:[#allocation2 + $0xb0] sm:$0xff]
      %v361 = vld [vmem:[#allocation2 + $0xb8] sm:$0xff]
      %v362 = vld [vmem:[#allocation2 + $0xc0] sm:$0xff]
      %v363 = vld [vmem:[#allocation2 + $0xc8] sm:$0xff]
      %v364 = vld [vmem:[#allocation2 + $0xd0] sm:$0xff]
      %v365 = vld [vmem:[#allocation2 + $0xd8] sm:$0xff]
      %v366 = vld [vmem:[#allocation2 + $0xe0] sm:$0xff]
      %v367 = vld [vmem:[#allocation2 + $0xe8] sm:$0xff]
      %v368 = vld [vmem:[#allocation2 + $0xf0] sm:$0xff]
      %v369 = vld [vmem:[#allocation2 + $0xf8] sm:$0xff]
      %v370 = vld [vmem:[%s274] sm:$0xf]
      %v371 = vld [vmem:[%s274 + $0x4] sm:$0xf]
      %v372 = vld [vmem:[%s274 + $0x8] sm:$0xf]
      %v373 = vld [vmem:[%s274 + $0xc] sm:$0xf]
      %v374 = vld [vmem:[%s274 + $0x10] sm:$0xf]
      %v375 = vld [vmem:[%s274 + $0x14] sm:$0xf]
      %v376 = vld [vmem:[%s274 + $0x18] sm:$0xf]
      %v377 = vld [vmem:[%s274 + $0x1c] sm:$0xf]
      %v378 = vld [vmem:[%s274 + $0x20] sm:$0xf]
      %v379 = vld [vmem:[%s274 + $0x24] sm:$0xf]
      %v380 = vld [vmem:[%s274 + $0x28] sm:$0xf]
      %v381 = vld [vmem:[%s274 + $0x2c] sm:$0xf]
      %v382 = vld [vmem:[%s274 + $0x30] sm:$0xf]
      %v383 = vld [vmem:[%s274 + $0x34] sm:$0xf]
      %v384 = vld [vmem:[%s274 + $0x38] sm:$0xf]
      %v385 = vld [vmem:[%s274 + $0x3c] sm:$0xf]
      %v386 = vld [vmem:[%s274 + $0x40] sm:$0xf]
      %v387 = vld [vmem:[%s274 + $0x44] sm:$0xf]
      %v388 = vld [vmem:[%s274 + $0x48] sm:$0xf]
      %v389 = vld [vmem:[%s274 + $0x4c] sm:$0xf]
      %v390 = vld [vmem:[%s274 + $0x50] sm:$0xf]
      %v391 = vld [vmem:[%s274 + $0x54] sm:$0xf]
      %v392 = vld [vmem:[%s274 + $0x58] sm:$0xf]
      %v393 = vld [vmem:[%s274 + $0x5c] sm:$0xf]
      %v394 = vld [vmem:[%s274 + $0x60] sm:$0xf]
      %v395 = vld [vmem:[%s274 + $0x64] sm:$0xf]
      %v396 = vld [vmem:[%s274 + $0x68] sm:$0xf]
      %v397 = vld [vmem:[%s274 + $0x6c] sm:$0xf]
      %v398 = vld [vmem:[%s274 + $0x70] sm:$0xf]
      %v399 = vld [vmem:[%s274 + $0x74] sm:$0xf]
      %v400 = vld [vmem:[%s274 + $0x78] sm:$0xf]
      %v401 = vld [vmem:[%s274 + $0x7c] sm:$0xf]
      %v402 = vld [vmem:[%s283] sm:$0xf]
      %v403 = vld [vmem:[%s283 + $0x4] sm:$0xf]
      %v404 = vld [vmem:[%s283 + $0x8] sm:$0xf]
      %v405 = vld [vmem:[%s283 + $0xc] sm:$0x3]
      %v438 = vunpack.c.l.b16 %v370
      %v439 = vunpack.c.l.b16 %v371
      %v440 = vunpack.c.l.b16 %v372
      %v441 = vunpack.c.l.b16 %v373
      %v442 = vunpack.c.l.b16 %v374
      %v443 = vunpack.c.l.b16 %v375
      %v444 = vunpack.c.l.b16 %v376
      %v445 = vunpack.c.l.b16 %v377
      %v446 = vunpack.c.l.b16 %v378
      %v447 = vunpack.c.l.b16 %v379
      %v448 = vunpack.c.l.b16 %v380
      %v449 = vunpack.c.l.b16 %v381
      %v450 = vunpack.c.l.b16 %v382
      %v451 = vunpack.c.l.b16 %v383
      %v452 = vunpack.c.l.b16 %v384
      %v453 = vunpack.c.l.b16 %v385
      %v454 = vunpack.c.l.b16 %v386
      %v455 = vunpack.c.l.b16 %v387
      %v456 = vunpack.c.l.b16 %v388
      %v457 = vunpack.c.l.b16 %v389
      %v458 = vunpack.c.l.b16 %v390
      %v459 = vunpack.c.l.b16 %v391
      %v460 = vunpack.c.l.b16 %v392
      %v461 = vunpack.c.l.b16 %v393
      %v462 = vunpack.c.l.b16 %v394
      %v463 = vunpack.c.l.b16 %v395
      %v464 = vunpack.c.l.b16 %v396
      %v465 = vunpack.c.l.b16 %v397
      %v466 = vunpack.c.l.b16 %v398
      %v467 = vunpack.c.l.b16 %v399
      %v468 = vunpack.c.l.b16 %v400
      %v469 = vunpack.c.l.b16 %v401
      %v470 = vpack.c.b16 %v439, %v438
      %v471 = vpack.c.b16 %v441, %v440
      %v472 = vpack.c.b16 %v443, %v442
      %v473 = vpack.c.b16 %v445, %v444
      %v474 = vpack.c.b16 %v447, %v446
      %v475 = vpack.c.b16 %v449, %v448
      %v476 = vpack.c.b16 %v451, %v450
      %v477 = vpack.c.b16 %v453, %v452
      %v478 = vpack.c.b16 %v455, %v454
      %v479 = vpack.c.b16 %v457, %v456
      %v480 = vpack.c.b16 %v459, %v458
      %v481 = vpack.c.b16 %v461, %v460
      %v482 = vpack.c.b16 %v463, %v462
      %v483 = vpack.c.b16 %v465, %v464
      %v484 = vpack.c.b16 %v467, %v466
      %v485 = vpack.c.b16 %v469, %v468
      %v490 = vunpack.c.l.b16 %v402
      %v491 = vunpack.c.l.b16 %v403
      %v492 = vunpack.c.l.b16 %v404
      %v493 = vunpack.c.l.b16 %v405
      %v494 = vpack.c.b16 %v491, %v490
      %v495 = vpack.c.b16 %v493, %v492
      %vm497 = vcmask 220160
      %v499 = vsel %vm497, %v470, 0
      %v502 = vsel %vm497, %v471, 0
      %v505 = vsel %vm497, %v472, 0
      %v508 = vsel %vm497, %v473, 0
      %v511 = vsel %vm497, %v474, 0
      %v514 = vsel %vm497, %v475, 0
      %v517 = vsel %vm497, %v476, 0
      %v520 = vsel %vm497, %v477, 0
      %v523 = vsel %vm497, %v478, 0
      %v526 = vsel %vm497, %v479, 0
      %v529 = vsel %vm497, %v480, 0
      %v532 = vsel %vm497, %v481, 0
      %v535 = vsel %vm497, %v482, 0
      %v538 = vsel %vm497, %v483, 0
      %v541 = vsel %vm497, %v484, 0
      %v544 = vsel %vm497, %v485, 0
      %vm546 = vcmask 1044480
      %vm547 = vcmask 1045504
      %v548 = vsel %vm546, 4294967295, 65535
      %v549 = vsel %vm547, %v548, 0
      %v551 = vand.u32 %v495, %v549
      %553 = vmatpush.bf16.msra.mxu0 0
      %554 = vmatpush.bf16.msra.mxu0 0
      %555 = vmatpush.bf16.msra.mxu0 0
      %556 = vmatpush.bf16.msra.mxu0 0
      %557 = vmatpush.bf16.msra.mxu0 0
      %558 = vmatpush.bf16.msra.mxu0 0
      %559 = vmatpush.bf16.msra.mxu0 %v551
      %560 = vmatpush.bf16.msra.mxu0 %v494
      %561 = vmatmul.bf16.gmra.mxu0 %v499
      %v562 = vpop.f32.mrf.mxu0
      %v563 = vadd.f32 0.0, %v562
      %v564 = vpop.f32.mrf.mxu0
      %v565 = vadd.f32 0.0, %v564
      %566 = vmatmul.bf16.gmra.mxu0 %v502
      %v567 = vpop.f32.mrf.mxu0
      %v568 = vadd.f32 0.0, %v567
      %v569 = vpop.f32.mrf.mxu0
      %v570 = vadd.f32 0.0, %v569
      %571 = vmatmul.bf16.gmra.mxu0 %v505
      %v572 = vpop.f32.mrf.mxu0
      %v573 = vadd.f32 0.0, %v572
      %v574 = vpop.f32.mrf.mxu0
      %v575 = vadd.f32 0.0, %v574
      %576 = vmatmul.bf16.gmra.mxu0 %v508
      %v577 = vpop.f32.mrf.mxu0
      %v578 = vadd.f32 0.0, %v577
      %v579 = vpop.f32.mrf.mxu0
      %v580 = vadd.f32 0.0, %v579
      %581 = vmatmul.bf16.gmra.mxu0 %v511
      %v582 = vpop.f32.mrf.mxu0
      %v583 = vadd.f32 0.0, %v582
      %v584 = vpop.f32.mrf.mxu0
      %v585 = vadd.f32 0.0, %v584
      %586 = vmatmul.bf16.gmra.mxu0 %v514
      %v587 = vpop.f32.mrf.mxu0
      %v588 = vadd.f32 0.0, %v587
      %v589 = vpop.f32.mrf.mxu0
      %v590 = vadd.f32 0.0, %v589
      %591 = vmatmul.bf16.gmra.mxu0 %v517
      %v592 = vpop.f32.mrf.mxu0
      %v593 = vadd.f32 0.0, %v592
      %v594 = vpop.f32.mrf.mxu0
      %v595 = vadd.f32 0.0, %v594
      %596 = vmatmul.bf16.gmra.mxu0 %v520
      %v597 = vpop.f32.mrf.mxu0
      %v598 = vadd.f32 0.0, %v597
      %v599 = vpop.f32.mrf.mxu0
      %v600 = vadd.f32 0.0, %v599
      %601 = vmatmul.bf16.gmra.mxu0 %v523
      %v602 = vpop.f32.mrf.mxu0
      %v603 = vadd.f32 0.0, %v602
      %v604 = vpop.f32.mrf.mxu0
      %v605 = vadd.f32 0.0, %v604
      %606 = vmatmul.bf16.gmra.mxu0 %v526
      %v607 = vpop.f32.mrf.mxu0
      %v608 = vadd.f32 0.0, %v607
      %v609 = vpop.f32.mrf.mxu0
      %v610 = vadd.f32 0.0, %v609
      %611 = vmatmul.bf16.gmra.mxu0 %v529
      %v612 = vpop.f32.mrf.mxu0
      %v613 = vadd.f32 0.0, %v612
      %v614 = vpop.f32.mrf.mxu0
      %v615 = vadd.f32 0.0, %v614
      %616 = vmatmul.bf16.gmra.mxu0 %v532
      %v617 = vpop.f32.mrf.mxu0
      %v618 = vadd.f32 0.0, %v617
      %v619 = vpop.f32.mrf.mxu0
      %v620 = vadd.f32 0.0, %v619
      %621 = vmatmul.bf16.gmra.mxu0 %v535
      %v622 = vpop.f32.mrf.mxu0
      %v623 = vadd.f32 0.0, %v622
      %v624 = vpop.f32.mrf.mxu0
      %v625 = vadd.f32 0.0, %v624
      %626 = vmatmul.bf16.gmra.mxu0 %v538
      %v627 = vpop.f32.mrf.mxu0
      %v628 = vadd.f32 0.0, %v627
      %v629 = vpop.f32.mrf.mxu0
      %v630 = vadd.f32 0.0, %v629
      %631 = vmatmul.bf16.gmra.mxu0 %v541
      %v632 = vpop.f32.mrf.mxu0
      %v633 = vadd.f32 0.0, %v632
      %v634 = vpop.f32.mrf.mxu0
      %v635 = vadd.f32 0.0, %v634
      %636 = vmatmul.bf16.gmra.mxu0 %v544
      %v637 = vpop.f32.mrf.mxu0
      %v638 = vadd.f32 0.0, %v637
      %v639 = vpop.f32.mrf.mxu0
      %v640 = vadd.f32 0.0, %v639
      %641 = vdwg.mxu0
      %v642 = vadd.f32 %v338, %v563
      %v643 = vadd.f32 %v339, %v565
      %v644 = vadd.f32 %v340, %v568
      %v645 = vadd.f32 %v341, %v570
      %v646 = vadd.f32 %v342, %v573
      %v647 = vadd.f32 %v343, %v575
      %v648 = vadd.f32 %v344, %v578
      %v649 = vadd.f32 %v345, %v580
      %v650 = vadd.f32 %v346, %v583
      %v651 = vadd.f32 %v347, %v585
      %v652 = vadd.f32 %v348, %v588
      %v653 = vadd.f32 %v349, %v590
      %v654 = vadd.f32 %v350, %v593
      %v655 = vadd.f32 %v351, %v595
      %v656 = vadd.f32 %v352, %v598
      %v657 = vadd.f32 %v353, %v600
      %v658 = vadd.f32 %v354, %v603
      %v659 = vadd.f32 %v355, %v605
      %v660 = vadd.f32 %v356, %v608
      %v661 = vadd.f32 %v357, %v610
      %v662 = vadd.f32 %v358, %v613
      %v663 = vadd.f32 %v359, %v615
      %v664 = vadd.f32 %v360, %v618
      %v665 = vadd.f32 %v361, %v620
      %v666 = vadd.f32 %v362, %v623
      %v667 = vadd.f32 %v363, %v625
      %v668 = vadd.f32 %v364, %v628
      %v669 = vadd.f32 %v365, %v630
      %v670 = vadd.f32 %v366, %v633
      %v671 = vadd.f32 %v367, %v635
      %v672 = vadd.f32 %v368, %v638
      %v673 = vadd.f32 %v369, %v640
      %vm674 = vcmask 523264
      %675 = vst.msk [vmem:[#allocation2] sm:$0xff] %vm674, %v642
      %676 = vst.msk [vmem:[#allocation2 + $0x8] sm:$0xff] %vm674, %v643
      %677 = vst.msk [vmem:[#allocation2 + $0x10] sm:$0xff] %vm674, %v644
      %678 = vst.msk [vmem:[#allocation2 + $0x18] sm:$0xff] %vm674, %v645
      %679 = vst.msk [vmem:[#allocation2 + $0x20] sm:$0xff] %vm674, %v646
      %680 = vst.msk [vmem:[#allocation2 + $0x28] sm:$0xff] %vm674, %v647
      %681 = vst.msk [vmem:[#allocation2 + $0x30] sm:$0xff] %vm674, %v648
      %682 = vst.msk [vmem:[#allocation2 + $0x38] sm:$0xff] %vm674, %v649
      %683 = vst.msk [vmem:[#allocation2 + $0x40] sm:$0xff] %vm674, %v650
      %684 = vst.msk [vmem:[#allocation2 + $0x48] sm:$0xff] %vm674, %v651
      %685 = vst.msk [vmem:[#allocation2 + $0x50] sm:$0xff] %vm674, %v652
      %686 = vst.msk [vmem:[#allocation2 + $0x58] sm:$0xff] %vm674, %v653
      %687 = vst.msk [vmem:[#allocation2 + $0x60] sm:$0xff] %vm674, %v654
      %688 = vst.msk [vmem:[#allocation2 + $0x68] sm:$0xff] %vm674, %v655
      %689 = vst.msk [vmem:[#allocation2 + $0x70] sm:$0xff] %vm674, %v656
      %690 = vst.msk [vmem:[#allocation2 + $0x78] sm:$0xff] %vm674, %v657
      %691 = vst.msk [vmem:[#allocation2 + $0x80] sm:$0xff] %vm674, %v658
      %692 = vst.msk [vmem:[#allocation2 + $0x88] sm:$0xff] %vm674, %v659
      %693 = vst.msk [vmem:[#allocation2 + $0x90] sm:$0xff] %vm674, %v660
      %694 = vst.msk [vmem:[#allocation2 + $0x98] sm:$0xff] %vm674, %v661
      %695 = vst.msk [vmem:[#allocation2 + $0xa0] sm:$0xff] %vm674, %v662
      %696 = vst.msk [vmem:[#allocation2 + $0xa8] sm:$0xff] %vm674, %v663
      %697 = vst.msk [vmem:[#allocation2 + $0xb0] sm:$0xff] %vm674, %v664
      %698 = vst.msk [vmem:[#allocation2 + $0xb8] sm:$0xff] %vm674, %v665
      %699 = vst.msk [vmem:[#allocation2 + $0xc0] sm:$0xff] %vm674, %v666
      %700 = vst.msk [vmem:[#allocation2 + $0xc8] sm:$0xff] %vm674, %v667
      %701 = vst.msk [vmem:[#allocation2 + $0xd0] sm:$0xff] %vm674, %v668
      %702 = vst.msk [vmem:[#allocation2 + $0xd8] sm:$0xff] %vm674, %v669
      %703 = vst.msk [vmem:[#allocation2 + $0xe0] sm:$0xff] %vm674, %v670
      %704 = vst.msk [vmem:[#allocation2 + $0xe8] sm:$0xff] %vm674, %v671
      %705 = vst.msk [vmem:[#allocation2 + $0xf0] sm:$0xff] %vm674, %v672
      %706 = vst.msk [vmem:[#allocation2 + $0xf8] sm:$0xff] %vm674, %v673
      // Predicated region
      $region41: #{tpu_custom_call.1} parent=35 // pred_check
        %p707 = pneg %p301
      $region42: #{tpu_custom_call.1} parent=35 // pred_check_branch
        %709 = sbr.rel (%p707) target = $region44
      $region43: #{tpu_custom_call.1} parent=35 // pred_region
        %v710 = vld [vmem:[#allocation2] sm:$0xff]
        %v711 = vld [vmem:[#allocation2 + $0x8] sm:$0xff]
        %v712 = vld [vmem:[#allocation2 + $0x10] sm:$0xff]
        %v713 = vld [vmem:[#allocation2 + $0x18] sm:$0xff]
        %v714 = vld [vmem:[#allocation2 + $0x20] sm:$0xff]
        %v715 = vld [vmem:[#allocation2 + $0x28] sm:$0xff]
        %v716 = vld [vmem:[#allocation2 + $0x30] sm:$0xff]
        %v717 = vld [vmem:[#allocation2 + $0x38] sm:$0xff]
        %v718 = vld [vmem:[#allocation2 + $0x40] sm:$0xff]
        %v719 = vld [vmem:[#allocation2 + $0x48] sm:$0xff]
        %v720 = vld [vmem:[#allocation2 + $0x50] sm:$0xff]
        %v721 = vld [vmem:[#allocation2 + $0x58] sm:$0xff]
        %v722 = vld [vmem:[#allocation2 + $0x60] sm:$0xff]
        %v723 = vld [vmem:[#allocation2 + $0x68] sm:$0xff]
        %v724 = vld [vmem:[#allocation2 + $0x70] sm:$0xff]
        %v725 = vld [vmem:[#allocation2 + $0x78] sm:$0xff]
        %v726 = vld [vmem:[#allocation2 + $0x80] sm:$0xff]
        %v727 = vld [vmem:[#allocation2 + $0x88] sm:$0xff]
        %v728 = vld [vmem:[#allocation2 + $0x90] sm:$0xff]
        %v729 = vld [vmem:[#allocation2 + $0x98] sm:$0xff]
        %v730 = vld [vmem:[#allocation2 + $0xa0] sm:$0xff]
        %v731 = vld [vmem:[#allocation2 + $0xa8] sm:$0xff]
        %v732 = vld [vmem:[#allocation2 + $0xb0] sm:$0xff]
        %v733 = vld [vmem:[#allocation2 + $0xb8] sm:$0xff]
        %v734 = vld [vmem:[#allocation2 + $0xc0] sm:$0xff]
        %v735 = vld [vmem:[#allocation2 + $0xc8] sm:$0xff]
        %v736 = vld [vmem:[#allocation2 + $0xd0] sm:$0xff]
        %v737 = vld [vmem:[#allocation2 + $0xd8] sm:$0xff]
        %v738 = vld [vmem:[#allocation2 + $0xe0] sm:$0xff]
        %v739 = vld [vmem:[#allocation2 + $0xe8] sm:$0xff]
        %v740 = vld [vmem:[#allocation2 + $0xf0] sm:$0xff]
        %v741 = vld [vmem:[#allocation2 + $0xf8] sm:$0xff]
        %v742 = vld [vmem:[%s287] sm:$0x1]
        %v744 = vperm.slane %v742, 0
        %v746 = vmul.f32 %v710, %v744
        %v747 = vmul.f32 %v711, %v744
        %v748 = vmul.f32 %v712, %v744
        %v749 = vmul.f32 %v713, %v744
        %v750 = vmul.f32 %v714, %v744
        %v751 = vmul.f32 %v715, %v744
        %v752 = vmul.f32 %v716, %v744
        %v753 = vmul.f32 %v717, %v744
        %v754 = vmul.f32 %v718, %v744
        %v755 = vmul.f32 %v719, %v744
        %v756 = vmul.f32 %v720, %v744
        %v757 = vmul.f32 %v721, %v744
        %v758 = vmul.f32 %v722, %v744
        %v759 = vmul.f32 %v723, %v744
        %v760 = vmul.f32 %v724, %v744
        %v761 = vmul.f32 %v725, %v744
        %v762 = vmul.f32 %v726, %v744
        %v763 = vmul.f32 %v727, %v744
        %v764 = vmul.f32 %v728, %v744
        %v765 = vmul.f32 %v729, %v744
        %v766 = vmul.f32 %v730, %v744
        %v767 = vmul.f32 %v731, %v744
        %v768 = vmul.f32 %v732, %v744
        %v769 = vmul.f32 %v733, %v744
        %v770 = vmul.f32 %v734, %v744
        %v771 = vmul.f32 %v735, %v744
        %v772 = vmul.f32 %v736, %v744
        %v773 = vmul.f32 %v737, %v744
        %v774 = vmul.f32 %v738, %v744
        %v775 = vmul.f32 %v739, %v744
        %v776 = vmul.f32 %v740, %v744
        %v777 = vmul.f32 %v741, %v744
        %v778 = vld [vmem:[%s290] sm:$0x1]
        %v780 = vperm.slane %v778, 0
        %v782 = vadd.f32 %v746, %v780
        %v783 = vadd.f32 %v747, %v780
        %v784 = vadd.f32 %v748, %v780
        %v785 = vadd.f32 %v749, %v780
        %v786 = vadd.f32 %v750, %v780
        %v787 = vadd.f32 %v751, %v780
        %v788 = vadd.f32 %v752, %v780
        %v789 = vadd.f32 %v753, %v780
        %v790 = vadd.f32 %v754, %v780
        %v791 = vadd.f32 %v755, %v780
        %v792 = vadd.f32 %v756, %v780
        %v793 = vadd.f32 %v757, %v780
        %v794 = vadd.f32 %v758, %v780
        %v795 = vadd.f32 %v759, %v780
        %v796 = vadd.f32 %v760, %v780
        %v797 = vadd.f32 %v761, %v780
        %v798 = vadd.f32 %v762, %v780
        %v799 = vadd.f32 %v763, %v780
        %v800 = vadd.f32 %v764, %v780
        %v801 = vadd.f32 %v765, %v780
        %v802 = vadd.f32 %v766, %v780
        %v803 = vadd.f32 %v767, %v780
        %v804 = vadd.f32 %v768, %v780
        %v805 = vadd.f32 %v769, %v780
        %v806 = vadd.f32 %v770, %v780
        %v807 = vadd.f32 %v771, %v780
        %v808 = vadd.f32 %v772, %v780
        %v809 = vadd.f32 %v773, %v780
        %v810 = vadd.f32 %v774, %v780
        %v811 = vadd.f32 %v775, %v780
        %v812 = vadd.f32 %v776, %v780
        %v813 = vadd.f32 %v777, %v780
        %v814 = vmax.f32 %v782, 0.0
        %v815 = vmax.f32 %v783, 0.0
        %v816 = vmax.f32 %v784, 0.0
        %v817 = vmax.f32 %v785, 0.0
        %v818 = vmax.f32 %v786, 0.0
        %v819 = vmax.f32 %v787, 0.0
        %v820 = vmax.f32 %v788, 0.0
        %v821 = vmax.f32 %v789, 0.0
        %v822 = vmax.f32 %v790, 0.0
        %v823 = vmax.f32 %v791, 0.0
        %v824 = vmax.f32 %v792, 0.0
        %v825 = vmax.f32 %v793, 0.0
        %v826 = vmax.f32 %v794, 0.0
        %v827 = vmax.f32 %v795, 0.0
        %v828 = vmax.f32 %v796, 0.0
        %v829 = vmax.f32 %v797, 0.0
        %v830 = vmax.f32 %v798, 0.0
        %v831 = vmax.f32 %v799, 0.0
        %v832 = vmax.f32 %v800, 0.0
        %v833 = vmax.f32 %v801, 0.0
        %v834 = vmax.f32 %v802, 0.0
        %v835 = vmax.f32 %v803, 0.0
        %v836 = vmax.f32 %v804, 0.0
        %v837 = vmax.f32 %v805, 0.0
        %v838 = vmax.f32 %v806, 0.0
        %v839 = vmax.f32 %v807, 0.0
        %v840 = vmax.f32 %v808, 0.0
        %v841 = vmax.f32 %v809, 0.0
        %v842 = vmax.f32 %v810, 0.0
        %v843 = vmax.f32 %v811, 0.0
        %v844 = vmax.f32 %v812, 0.0
        %v845 = vmax.f32 %v813, 0.0
        %v846 = vpack.c.bf16 %v814, %v814
        %v847 = vpack.c.bf16 %v815, %v815
        %v848 = vpack.c.bf16 %v816, %v816
        %v849 = vpack.c.bf16 %v817, %v817
        %v850 = vpack.c.bf16 %v818, %v818
        %v851 = vpack.c.bf16 %v819, %v819
        %v852 = vpack.c.bf16 %v820, %v820
        %v853 = vpack.c.bf16 %v821, %v821
        %v854 = vpack.c.bf16 %v822, %v822
        %v855 = vpack.c.bf16 %v823, %v823
        %v856 = vpack.c.bf16 %v824, %v824
        %v857 = vpack.c.bf16 %v825, %v825
        %v858 = vpack.c.bf16 %v826, %v826
        %v859 = vpack.c.bf16 %v827, %v827
        %v860 = vpack.c.bf16 %v828, %v828
        %v861 = vpack.c.bf16 %v829, %v829
        %v862 = vpack.c.bf16 %v830, %v830
        %v863 = vpack.c.bf16 %v831, %v831
        %v864 = vpack.c.bf16 %v832, %v832
        %v865 = vpack.c.bf16 %v833, %v833
        %v866 = vpack.c.bf16 %v834, %v834
        %v867 = vpack.c.bf16 %v835, %v835
        %v868 = vpack.c.bf16 %v836, %v836
        %v869 = vpack.c.bf16 %v837, %v837
        %v870 = vpack.c.bf16 %v838, %v838
        %v871 = vpack.c.bf16 %v839, %v839
        %v872 = vpack.c.bf16 %v840, %v840
        %v873 = vpack.c.bf16 %v841, %v841
        %v874 = vpack.c.bf16 %v842, %v842
        %v875 = vpack.c.bf16 %v843, %v843
        %v876 = vpack.c.bf16 %v844, %v844
        %v877 = vpack.c.bf16 %v845, %v845
        %vm878 = vcmask 519168
        %879 = vst.msk [vmem:[%s298] sm:$0xf] %vm878, %v846
        %880 = vst.msk [vmem:[%s298 + $0x4] sm:$0xf] %vm878, %v847
        %881 = vst.msk [vmem:[%s298 + $0x8] sm:$0xf] %vm878, %v848
        %882 = vst.msk [vmem:[%s298 + $0xc] sm:$0xf] %vm878, %v849
        %883 = vst.msk [vmem:[%s298 + $0x10] sm:$0xf] %vm878, %v850
        %884 = vst.msk [vmem:[%s298 + $0x14] sm:$0xf] %vm878, %v851
        %885 = vst.msk [vmem:[%s298 + $0x18] sm:$0xf] %vm878, %v852
        %886 = vst.msk [vmem:[%s298 + $0x1c] sm:$0xf] %vm878, %v853
        %887 = vst.msk [vmem:[%s298 + $0x20] sm:$0xf] %vm878, %v854
        %888 = vst.msk [vmem:[%s298 + $0x24] sm:$0xf] %vm878, %v855
        %889 = vst.msk [vmem:[%s298 + $0x28] sm:$0xf] %vm878, %v856
        %890 = vst.msk [vmem:[%s298 + $0x2c] sm:$0xf] %vm878, %v857
        %891 = vst.msk [vmem:[%s298 + $0x30] sm:$0xf] %vm878, %v858
        %892 = vst.msk [vmem:[%s298 + $0x34] sm:$0xf] %vm878, %v859
        %893 = vst.msk [vmem:[%s298 + $0x38] sm:$0xf] %vm878, %v860
        %894 = vst.msk [vmem:[%s298 + $0x3c] sm:$0xf] %vm878, %v861
        %895 = vst.msk [vmem:[%s298 + $0x40] sm:$0xf] %vm878, %v862
        %896 = vst.msk [vmem:[%s298 + $0x44] sm:$0xf] %vm878, %v863
        %897 = vst.msk [vmem:[%s298 + $0x48] sm:$0xf] %vm878, %v864
        %898 = vst.msk [vmem:[%s298 + $0x4c] sm:$0xf] %vm878, %v865
        %899 = vst.msk [vmem:[%s298 + $0x50] sm:$0xf] %vm878, %v866
        %900 = vst.msk [vmem:[%s298 + $0x54] sm:$0xf] %vm878, %v867
        %901 = vst.msk [vmem:[%s298 + $0x58] sm:$0xf] %vm878, %v868
        %902 = vst.msk [vmem:[%s298 + $0x5c] sm:$0xf] %vm878, %v869
        %903 = vst.msk [vmem:[%s298 + $0x60] sm:$0xf] %vm878, %v870
        %904 = vst.msk [vmem:[%s298 + $0x64] sm:$0xf] %vm878, %v871
        %905 = vst.msk [vmem:[%s298 + $0x68] sm:$0xf] %vm878, %v872
        %906 = vst.msk [vmem:[%s298 + $0x6c] sm:$0xf] %vm878, %v873
        %907 = vst.msk [vmem:[%s298 + $0x70] sm:$0xf] %vm878, %v874
        %908 = vst.msk [vmem:[%s298 + $0x74] sm:$0xf] %vm878, %v875
        %909 = vst.msk [vmem:[%s298 + $0x78] sm:$0xf] %vm878, %v876
        %910 = vst.msk [vmem:[%s298 + $0x7c] sm:$0xf] %vm878, %v877
      $region44: #{tpu_custom_call.1} parent=35 // pred_fallthru
        _
      %s911 = smul.u32 32, %s20
      %p912 = scmp.lt.s32.totalorder %s911, 63
      %s913 = scalar_select %p912, %s911, 63
      %p914 = scmp.lt.s32.totalorder %s21, 0
      %s915 = scalar_select %p914, %s21, 0
      %s916 = sadd.s32 %s915, %s913
      %s917 = smul.addr %s916, 4
      %s918 = scalar_lea.vmem %s4, %s917
      // Predicated region
      $region45: #{tpu_custom_call.1} parent=35 // pred_check
        %p919 = pneg %p162
      $region46: #{tpu_custom_call.1} parent=35 // pred_check_branch
        %921 = sbr.rel (%p919) target = $region48
      $region47: #{tpu_custom_call.1} parent=35 // pred_region
        %s922 = smul.u32 32, %s20
      $region48: #{tpu_custom_call.1} parent=35 // pred_fallthru
        _
    $region36: #{tpu_custom_call.1} parent=5 // pred_fallthru
      _
    %p923 = scmp.le.s32.totalorder 2, %s10
    // Predicated region
    $region49: #{tpu_custom_call.1} parent=5 // pred_check
      %p924 = pneg %p923
    $region50: #{tpu_custom_call.1} parent=5 // pred_check_branch
      %926 = sbr.rel (%p924) target = $region52
    $region51: #{tpu_custom_call.1} parent=5 // pred_region
      %s927 = ssub.s32 %s10, 2
      // Predicated region
      $region53: #{tpu_custom_call.1} parent=51 // pred_check
        %p928 = pneg %p168
      $region54: #{tpu_custom_call.1} parent=51 // pred_check_branch
        %930 = sbr.rel (%p928) target = $region56
      $region55: #{tpu_custom_call.1} parent=51 // pred_region
        %s931 = smul.u32 32, %s23
        %p932 = scmp.lt.s32.totalorder %s931, 63
        %s933 = scalar_select %p932, %s931, 63
        %p934 = scmp.lt.s32.totalorder %s24, 0
        %s935 = scalar_select %p934, %s24, 0
        %s936 = sadd.s32 %s935, %s933
        %s937 = smul.addr %s936, 4
        %s938 = scalar_lea.vmem %s4, %s937
      $region56: #{tpu_custom_call.1} parent=51 // pred_fallthru
        _
    $region52: #{tpu_custom_call.1} parent=5 // pred_fallthru
      _
  $region6: #{tpu_custom_call.1} parent=0 // loop_footer
    %s14 = sadd.s32 1, %s10
  $region7: #{tpu_custom_call.1} parent=0 // loop_footer_branch
    %9 = sbr.rel target = $region3
  $region8: #{tpu_custom_call.1} parent=0 // loop_exit
    _

</llo_original>
